<compile_context>
chip_gen: v5e
topology: v5e:2x2
jax: 0.10.0
libtpu: 0.0.40
codegen_flags: <defaults>
</compile_context>

<pallas_src>
import functools

import jax
import jax.numpy as jnp
from jax import lax
from jax.experimental import pallas as pl
from jax.experimental.pallas import tpu as pltpu


def _round_up(x, m):
    return ((x + m - 1) // m) * m


def fcn_head_kernel(x_ref, w1_ref, bnb_ref, w2_ref, b2_ref, o_ref, *, Wp, S, use_roll):
    # x_ref:   (1, Cin, L)     bf16  flattened zero-padded rows of one spatial tile (+2 halo rows)
    # w1_ref:  (9, Cmid, Cin)  bf16  3x3 conv weights (BN scale folded); leading index k = 3*dh+dw
    # bnb_ref: (Cmid, 1)       f32   folded BN bias
    # w2_ref:  (Cout, Cmid)    bf16  1x1 conv weights (transposed)
    # b2_ref:  (Cout, 1)       f32   1x1 conv bias
    # o_ref:   (1, Cout, S)          flattened output tile; valid at p = h_local*Wp + w, w < W
    x2d = x_ref[0]                                              # (Cin, L)

    acc = None
    for dh in range(3):
        base = x2d[:, dh * Wp:dh * Wp + S]                      # (Cin, S) static slice (dw == 0)
        for dw in range(3):
            if dw == 0 or not use_roll:
                tap = base if dw == 0 else x2d[:, dh * Wp + dw:dh * Wp + dw + S]
            else:
                # roll by -dw (== S - dw mod S): lane i <- base[i + dw].  The dw wrapped lanes
                # land at p >= S - 2 > (TH-1)*Wp + W - 1, i.e. only in cropped positions.
                tap = pltpu.roll(base, shift=S - dw, axis=1)
            part = jnp.dot(w1_ref[3 * dh + dw], tap, preferred_element_type=jnp.float32)
            acc = part if acc is None else acc + part            # (Cmid, S) f32

    # Folded BN bias + ReLU.  Dropout(0.1) is identity at inference time.
    y = jnp.maximum(acc + bnb_ref[...], 0.0)

    # 1x1 conv with bias (lane-dense (Cout, S) result).
    out = jnp.dot(w2_ref[...], y.astype(w2_ref.dtype),
                  preferred_element_type=jnp.float32) + b2_ref[...]
    o_ref[0] = out.astype(o_ref.dtype)


def fcn_head_forward(x_nchw, w1_hwio, bn_gamma, bn_beta, bn_mean, bn_var, w2, b2,
                     eps=1e-5, *, tile_lanes=2048, out_dtype=jnp.float32,
                     use_roll=True, vmem_limit_mb=64):
    """FCNHead forward (inference). x_nchw: (N, Cin, H, W) -> (N, Cout, H, W)."""
    N, Cin, H, W = x_nchw.shape
    Cmid = w1_hwio.shape[3]
    Cout = w2.shape[1]
    Wp = W + 2

    # Row tiling: TH output rows per spatial tile (~tile_lanes lanes per tile).
    TH = max(1, min(H, tile_lanes // Wp))
    n_tiles = -(-H // TH)
    H_pad = n_tiles * TH
    S = _round_up(TH * Wp, 128)            # lane-dense flattened output extent per tile
    L = _round_up(S + 2 * Wp + 2, 128)     # per-tile input extent (taps read up to 2*Wp+2 ahead)

    # ---- Fold BatchNorm (eval mode) into conv1 scale + bias (tiny, host/XLA side). ----
    scale = bn_gamma / jnp.sqrt(bn_var + eps)                                    # (Cmid,)
    bn_bias = (bn_beta - bn_mean * scale).reshape(Cmid, 1).astype(jnp.float32)
    w1_scaled = w1_hwio * scale                                                  # (3,3,Cin,Cmid)
    # (3,3,Cin,Cmid) -> (9, Cmid, Cin); leading index k = 3*dh + dw matches kernel tap order.
    w1m = jnp.transpose(w1_scaled, (0, 1, 3, 2)).reshape(9, Cmid, Cin).astype(jnp.bfloat16)
    w2t = jnp.transpose(w2, (1, 0)).astype(jnp.bfloat16)                         # (Cout, Cmid)
    b2c = b2.reshape(Cout, 1).astype(jnp.float32)

    # ---- Input prep: bf16 FIRST, then one pad + one halo-row gather + one tail pad. ----
    x_bf = x_nchw.astype(jnp.bfloat16)
    # conv padding=1 (top/left/right); bottom pad also fills the last partial row-tile.
    x_pad = jnp.pad(x_bf, ((0, 0), (0, 0), (1, 1 + H_pad - H), (1, 1)))    # (N,Cin,H_pad+2,Wp)
    # Tile t needs padded rows [t*TH, t*TH + TH + 2): a 2-row halo shared with the next tile.
    row_idx = (jnp.arange(n_tiles)[:, None] * TH + jnp.arange(TH + 2)[None, :]).reshape(-1)
    x_tiles = jnp.take(x_pad, row_idx, axis=2)                  # (N, Cin, n_tiles*(TH+2), Wp)
    x_tiles = x_tiles.reshape(N, Cin, n_tiles, (TH + 2) * Wp)
    x_tiles = jnp.pad(x_tiles, ((0, 0), (0, 0), (0, 0), (0, L - (TH + 2) * Wp)))
    x_flat = x_tiles.reshape(N, Cin, n_tiles * L)

    kernel = functools.partial(fcn_head_kernel, Wp=Wp, S=S, use_roll=use_roll)

    out_bytes = jnp.dtype(out_dtype).itemsize
    flops = 2 * N * n_tiles * S * (9 * Cin * Cmid + Cmid * Cout)
    bytes_accessed = (x_flat.size * 2 + w1m.size * 2 + w2t.size * 2
                      + bn_bias.size * 4 + b2c.size * 4 + N * Cout * n_tiles * S * out_bytes)

    out_flat = pl.pallas_call(
        kernel,
        out_shape=jax.ShapeDtypeStruct((N, Cout, n_tiles * S), out_dtype),
        grid=(N, n_tiles),
        in_specs=[
            pl.BlockSpec((1, Cin, L), lambda n, t: (n, 0, t)),
            pl.BlockSpec((9, Cmid, Cin), lambda n, t: (0, 0, 0)),   # constant index: fetched once
            pl.BlockSpec((Cmid, 1), lambda n, t: (0, 0)),
            pl.BlockSpec((Cout, Cmid), lambda n, t: (0, 0)),
            pl.BlockSpec((Cout, 1), lambda n, t: (0, 0)),
        ],
        out_specs=pl.BlockSpec((1, Cout, S), lambda n, t: (n, 0, t)),
        compiler_params=pltpu.CompilerParams(
            dimension_semantics=("parallel", "parallel"),
            vmem_limit_bytes=vmem_limit_mb * 1024 * 1024),
        cost_estimate=pl.CostEstimate(flops=flops, transcendentals=0,
                                      bytes_accessed=bytes_accessed),
    )(x_flat, w1m, bn_bias, w2t, b2c)

    # Valid outputs of tile t live at lanes p = h_local*Wp + w (w < W); everything else
    # (w >= W columns, padded tail rows, roll-wrapped lanes) is garbage and cropped here.
    out = out_flat.reshape(N, Cout, n_tiles, S)[:, :, :, :TH * Wp]
    out = out.reshape(N, Cout, H_pad, Wp)[:, :, :H, :W]
    return out


if __name__ == "__main__":
    # Small shapes consistent with the module: in_channels=16 -> inter_channels=4.
    N, Cin, H, W = 2, 16, 16, 16
    Cmid = Cin // 4
    Cout = 8

    key = jax.random.PRNGKey(0)
    ks = jax.random.split(key, 8)

    x = jax.random.normal(ks[0], (N, Cin, H, W), dtype=jnp.float32)
    w1 = jax.random.normal(ks[1], (3, 3, Cin, Cmid), dtype=jnp.float32) * 0.1   # 3x3 conv, HWIO
    bn_gamma = jnp.ones((Cmid,), jnp.float32) + 0.1 * jax.random.normal(ks[2], (Cmid,))
    bn_beta = 0.1 * jax.random.normal(ks[3], (Cmid,))
    bn_mean = 0.1 * jax.random.normal(ks[4], (Cmid,))
    bn_var = jnp.abs(jax.random.normal(ks[5], (Cmid,))) + 0.5
    w2 = jax.random.normal(ks[6], (Cmid, Cout), dtype=jnp.float32) * 0.1        # 1x1 conv
    b2 = 0.1 * jax.random.normal(ks[7], (Cout,))

    def run(**cfg):
        fwd = jax.jit(lambda *a: fcn_head_forward(*a, **cfg))
        return jax.block_until_ready(fwd(x, w1, bn_gamma, bn_beta, bn_mean, bn_var, w2, b2))

    use_roll = True
    try:
        out = run(use_roll=True)               # single spatial tile at these toy shapes
    except Exception:
        # TODO(synk): drop this fallback once pltpu.roll on packed bf16 is available everywhere.
        use_roll = False
        out = run(use_roll=False)
    # Force 3 row-tiles (TH = 7) to exercise the halo / multi-tile grid path.
    out_tiled = run(use_roll=use_roll, tile_lanes=128)

    assert out.shape == (N, Cout, H, W), out.shape
    assert out_tiled.shape == (N, Cout, H, W), out_tiled.shape

    # Pure-JAX f32 reference (tolerance absorbs bf16 operand rounding inside the kernel).
    conv = lax.conv_general_dilated(x, w1, window_strides=(1, 1), padding="SAME",
                                    dimension_numbers=("NCHW", "HWIO", "NCHW"))
    scale = bn_gamma / jnp.sqrt(bn_var + 1e-5)
    bn = conv * scale[None, :, None, None] + (bn_beta - bn_mean * scale)[None, :, None, None]
    relu = jnp.maximum(bn, 0.0)
    ref = jnp.einsum("nchw,co->nohw", relu, w2) + b2[None, :, None, None]

    err = float(jnp.max(jnp.abs(out - ref)))
    err_t = float(jnp.max(jnp.abs(out_tiled - ref)))
    assert err < 0.1, f"max abs error {err}"
    assert err_t < 0.1, f"max abs error (tiled) {err_t}"

    print("KERNEL_OK")
</pallas_src>

<mosaic_0001>
module attributes {stable_mosaic.version = 11 : i64} {
  func.func @fcn_head_kernel(%arg0: i32, %arg1: i32, %arg2: memref<1x16x512xbf16, #tpu.memory_space<vmem>>, %arg3: memref<9x4x16xbf16, #tpu.memory_space<vmem>>, %arg4: memref<4x1xf32, #tpu.memory_space<vmem>>, %arg5: memref<8x4xbf16, #tpu.memory_space<vmem>>, %arg6: memref<8x1xf32, #tpu.memory_space<vmem>>, %arg7: memref<1x8x384xf32, #tpu.memory_space<vmem>>) attributes {dimension_semantics = [#tpu.dimension_semantics<parallel>, #tpu.dimension_semantics<parallel>], iteration_bounds = array<i64: 2, 1>, scalar_prefetch = 0 : i64, scratch_operands = 0 : i64, tpu.core_type = #tpu.core_type<tc>, window_params = [{transform_indices = @transform_0, window_bounds = array<i64: 1, 16, 512>}, {pipeline_mode = #tpu.pipeline_mode<synchronous>, transform_indices = @transform_1, window_bounds = array<i64: 9, 4, 16>}, {pipeline_mode = #tpu.pipeline_mode<synchronous>, transform_indices = @transform_2, window_bounds = array<i64: 4, 1>}, {pipeline_mode = #tpu.pipeline_mode<synchronous>, transform_indices = @transform_3, window_bounds = array<i64: 8, 4>}, {pipeline_mode = #tpu.pipeline_mode<synchronous>, transform_indices = @transform_4, window_bounds = array<i64: 8, 1>}, {transform_indices = @transform_5, window_bounds = array<i64: 1, 8, 384>}]} {
    %c0 = arith.constant 0 : index
    %c0_0 = arith.constant 0 : index
    %c0_1 = arith.constant 0 : index
    %0 = vector.load %arg2[%c0, %c0_0, %c0_1] : memref<1x16x512xbf16, #tpu.memory_space<vmem>>, vector<1x16x512xbf16>
    %1 = vector.shape_cast %0 : vector<1x16x512xbf16> to vector<16x512xbf16>
    %2 = vector.extract_strided_slice %1 {offsets = [0, 0], sizes = [16, 384], strides = [1, 1]} : vector<16x512xbf16> to vector<16x384xbf16>
    %c0_2 = arith.constant 0 : index
    %c0_3 = arith.constant 0 : index
    %c0_4 = arith.constant 0 : index
    %3 = vector.load %arg3[%c0_2, %c0_3, %c0_4] : memref<9x4x16xbf16, #tpu.memory_space<vmem>>, vector<1x4x16xbf16>
    %4 = vector.shape_cast %3 : vector<1x4x16xbf16> to vector<4x16xbf16>
    %cst = arith.constant dense<0.000000e+00> : vector<4x384xf32>
    %5 = tpu.matmul %4, %2, %cst {dimension_numbers = #tpu.dot_dimension_numbers<[1], [0], [0], [1], [0, 0, 1, 1], [], []>} : vector<4x16xbf16>, vector<16x384xbf16>, vector<4x384xf32> -> vector<4x384xf32>
    %c383_i32 = arith.constant 383 : i32
    %6 = tpu.dynamic_rotate %2 by %c383_i32 dim 1 : vector<16x384xbf16>, i32 -> vector<16x384xbf16>
    %c1 = arith.constant 1 : index
    %c0_5 = arith.constant 0 : index
    %c0_6 = arith.constant 0 : index
    %7 = vector.load %arg3[%c1, %c0_5, %c0_6] : memref<9x4x16xbf16, #tpu.memory_space<vmem>>, vector<1x4x16xbf16>
    %8 = vector.shape_cast %7 : vector<1x4x16xbf16> to vector<4x16xbf16>
    %cst_7 = arith.constant dense<0.000000e+00> : vector<4x384xf32>
    %9 = tpu.matmul %8, %6, %cst_7 {dimension_numbers = #tpu.dot_dimension_numbers<[1], [0], [0], [1], [0, 0, 1, 1], [], []>} : vector<4x16xbf16>, vector<16x384xbf16>, vector<4x384xf32> -> vector<4x384xf32>
    %10 = arith.addf %5, %9 : vector<4x384xf32>
    %c382_i32 = arith.constant 382 : i32
    %11 = tpu.dynamic_rotate %2 by %c382_i32 dim 1 : vector<16x384xbf16>, i32 -> vector<16x384xbf16>
    %c2 = arith.constant 2 : index
    %c0_8 = arith.constant 0 : index
    %c0_9 = arith.constant 0 : index
    %12 = vector.load %arg3[%c2, %c0_8, %c0_9] : memref<9x4x16xbf16, #tpu.memory_space<vmem>>, vector<1x4x16xbf16>
    %13 = vector.shape_cast %12 : vector<1x4x16xbf16> to vector<4x16xbf16>
    %cst_10 = arith.constant dense<0.000000e+00> : vector<4x384xf32>
    %14 = tpu.matmul %13, %11, %cst_10 {dimension_numbers = #tpu.dot_dimension_numbers<[1], [0], [0], [1], [0, 0, 1, 1], [], []>} : vector<4x16xbf16>, vector<16x384xbf16>, vector<4x384xf32> -> vector<4x384xf32>
    %15 = arith.addf %10, %14 : vector<4x384xf32>
    %16 = vector.extract_strided_slice %1 {offsets = [0, 18], sizes = [16, 384], strides = [1, 1]} : vector<16x512xbf16> to vector<16x384xbf16>
    %c3 = arith.constant 3 : index
    %c0_11 = arith.constant 0 : index
    %c0_12 = arith.constant 0 : index
    %17 = vector.load %arg3[%c3, %c0_11, %c0_12] : memref<9x4x16xbf16, #tpu.memory_space<vmem>>, vector<1x4x16xbf16>
    %18 = vector.shape_cast %17 : vector<1x4x16xbf16> to vector<4x16xbf16>
    %cst_13 = arith.constant dense<0.000000e+00> : vector<4x384xf32>
    %19 = tpu.matmul %18, %16, %cst_13 {dimension_numbers = #tpu.dot_dimension_numbers<[1], [0], [0], [1], [0, 0, 1, 1], [], []>} : vector<4x16xbf16>, vector<16x384xbf16>, vector<4x384xf32> -> vector<4x384xf32>
    %20 = arith.addf %15, %19 : vector<4x384xf32>
    %c383_i32_14 = arith.constant 383 : i32
    %21 = tpu.dynamic_rotate %16 by %c383_i32_14 dim 1 : vector<16x384xbf16>, i32 -> vector<16x384xbf16>
    %c4 = arith.constant 4 : index
    %c0_15 = arith.constant 0 : index
    %c0_16 = arith.constant 0 : index
    %22 = vector.load %arg3[%c4, %c0_15, %c0_16] : memref<9x4x16xbf16, #tpu.memory_space<vmem>>, vector<1x4x16xbf16>
    %23 = vector.shape_cast %22 : vector<1x4x16xbf16> to vector<4x16xbf16>
    %cst_17 = arith.constant dense<0.000000e+00> : vector<4x384xf32>
    %24 = tpu.matmul %23, %21, %cst_17 {dimension_numbers = #tpu.dot_dimension_numbers<[1], [0], [0], [1], [0, 0, 1, 1], [], []>} : vector<4x16xbf16>, vector<16x384xbf16>, vector<4x384xf32> -> vector<4x384xf32>
    %25 = arith.addf %20, %24 : vector<4x384xf32>
    %c382_i32_18 = arith.constant 382 : i32
    %26 = tpu.dynamic_rotate %16 by %c382_i32_18 dim 1 : vector<16x384xbf16>, i32 -> vector<16x384xbf16>
    %c5 = arith.constant 5 : index
    %c0_19 = arith.constant 0 : index
    %c0_20 = arith.constant 0 : index
    %27 = vector.load %arg3[%c5, %c0_19, %c0_20] : memref<9x4x16xbf16, #tpu.memory_space<vmem>>, vector<1x4x16xbf16>
    %28 = vector.shape_cast %27 : vector<1x4x16xbf16> to vector<4x16xbf16>
    %cst_21 = arith.constant dense<0.000000e+00> : vector<4x384xf32>
    %29 = tpu.matmul %28, %26, %cst_21 {dimension_numbers = #tpu.dot_dimension_numbers<[1], [0], [0], [1], [0, 0, 1, 1], [], []>} : vector<4x16xbf16>, vector<16x384xbf16>, vector<4x384xf32> -> vector<4x384xf32>
    %30 = arith.addf %25, %29 : vector<4x384xf32>
    %31 = vector.extract_strided_slice %1 {offsets = [0, 36], sizes = [16, 384], strides = [1, 1]} : vector<16x512xbf16> to vector<16x384xbf16>
    %c6 = arith.constant 6 : index
    %c0_22 = arith.constant 0 : index
    %c0_23 = arith.constant 0 : index
    %32 = vector.load %arg3[%c6, %c0_22, %c0_23] : memref<9x4x16xbf16, #tpu.memory_space<vmem>>, vector<1x4x16xbf16>
    %33 = vector.shape_cast %32 : vector<1x4x16xbf16> to vector<4x16xbf16>
    %cst_24 = arith.constant dense<0.000000e+00> : vector<4x384xf32>
    %34 = tpu.matmul %33, %31, %cst_24 {dimension_numbers = #tpu.dot_dimension_numbers<[1], [0], [0], [1], [0, 0, 1, 1], [], []>} : vector<4x16xbf16>, vector<16x384xbf16>, vector<4x384xf32> -> vector<4x384xf32>
    %35 = arith.addf %30, %34 : vector<4x384xf32>
    %c383_i32_25 = arith.constant 383 : i32
    %36 = tpu.dynamic_rotate %31 by %c383_i32_25 dim 1 : vector<16x384xbf16>, i32 -> vector<16x384xbf16>
    %c7 = arith.constant 7 : index
    %c0_26 = arith.constant 0 : index
    %c0_27 = arith.constant 0 : index
    %37 = vector.load %arg3[%c7, %c0_26, %c0_27] : memref<9x4x16xbf16, #tpu.memory_space<vmem>>, vector<1x4x16xbf16>
    %38 = vector.shape_cast %37 : vector<1x4x16xbf16> to vector<4x16xbf16>
    %cst_28 = arith.constant dense<0.000000e+00> : vector<4x384xf32>
    %39 = tpu.matmul %38, %36, %cst_28 {dimension_numbers = #tpu.dot_dimension_numbers<[1], [0], [0], [1], [0, 0, 1, 1], [], []>} : vector<4x16xbf16>, vector<16x384xbf16>, vector<4x384xf32> -> vector<4x384xf32>
    %40 = arith.addf %35, %39 : vector<4x384xf32>
    %c382_i32_29 = arith.constant 382 : i32
    %41 = tpu.dynamic_rotate %31 by %c382_i32_29 dim 1 : vector<16x384xbf16>, i32 -> vector<16x384xbf16>
    %c8 = arith.constant 8 : index
    %c0_30 = arith.constant 0 : index
    %c0_31 = arith.constant 0 : index
    %42 = vector.load %arg3[%c8, %c0_30, %c0_31] : memref<9x4x16xbf16, #tpu.memory_space<vmem>>, vector<1x4x16xbf16>
    %43 = vector.shape_cast %42 : vector<1x4x16xbf16> to vector<4x16xbf16>
    %cst_32 = arith.constant dense<0.000000e+00> : vector<4x384xf32>
    %44 = tpu.matmul %43, %41, %cst_32 {dimension_numbers = #tpu.dot_dimension_numbers<[1], [0], [0], [1], [0, 0, 1, 1], [], []>} : vector<4x16xbf16>, vector<16x384xbf16>, vector<4x384xf32> -> vector<4x384xf32>
    %45 = arith.addf %40, %44 : vector<4x384xf32>
    %c0_33 = arith.constant 0 : index
    %c0_34 = arith.constant 0 : index
    %46 = vector.load %arg4[%c0_33, %c0_34] : memref<4x1xf32, #tpu.memory_space<vmem>>, vector<4x1xf32>
    %47 = vector.broadcast %46 : vector<4x1xf32> to vector<4x384xf32>
    %48 = arith.addf %45, %47 : vector<4x384xf32>
    %cst_35 = arith.constant 0.000000e+00 : f32
    %49 = vector.broadcast %cst_35 : f32 to vector<4x384xf32>
    %50 = arith.maximumf %48, %49 : vector<4x384xf32>
    %c0_36 = arith.constant 0 : index
    %c0_37 = arith.constant 0 : index
    %51 = vector.load %arg5[%c0_36, %c0_37] : memref<8x4xbf16, #tpu.memory_space<vmem>>, vector<8x4xbf16>
    %52 = arith.truncf %50 : vector<4x384xf32> to vector<4x384xbf16>
    %cst_38 = arith.constant dense<0.000000e+00> : vector<8x384xf32>
    %53 = tpu.matmul %51, %52, %cst_38 {dimension_numbers = #tpu.dot_dimension_numbers<[1], [0], [0], [1], [0, 0, 1, 1], [], []>} : vector<8x4xbf16>, vector<4x384xbf16>, vector<8x384xf32> -> vector<8x384xf32>
    %c0_39 = arith.constant 0 : index
    %c0_40 = arith.constant 0 : index
    %54 = vector.load %arg6[%c0_39, %c0_40] : memref<8x1xf32, #tpu.memory_space<vmem>>, vector<8x1xf32>
    %55 = vector.broadcast %54 : vector<8x1xf32> to vector<8x384xf32>
    %56 = arith.addf %53, %55 : vector<8x384xf32>
    %c0_41 = arith.constant 0 : index
    %c0_42 = arith.constant 0 : index
    %c0_43 = arith.constant 0 : index
    %57 = vector.load %arg7[%c0_41, %c0_42, %c0_43] : memref<1x8x384xf32, #tpu.memory_space<vmem>>, vector<1x8x384xf32>
    %58 = vector.shape_cast %57 : vector<1x8x384xf32> to vector<8x384xf32>
    %59 = vector.shape_cast %56 : vector<8x384xf32> to vector<1x8x384xf32>
    tpu.vector_store %arg7[%c0_41, %c0_42, %c0_43], %59 {strides = array<i32>} : memref<1x8x384xf32, #tpu.memory_space<vmem>>, vector<1x8x384xf32>,
    return
  }
  func.func @transform_0(%arg0: i32, %arg1: i32) -> (i32, i32, i32) {
    %c0_i32 = arith.constant 0 : i32
    %c0_i32_0 = arith.constant 0 : i32
    return %arg0, %c0_i32, %arg1 : i32, i32, i32
  }
  func.func @transform_1(%arg0: i32, %arg1: i32) -> (i32, i32, i32) {
    %c0_i32 = arith.constant 0 : i32
    %c0_i32_0 = arith.constant 0 : i32
    %c0_i32_1 = arith.constant 0 : i32
    %c0_i32_2 = arith.constant 0 : i32
    return %c0_i32, %c0_i32_0, %c0_i32_1 : i32, i32, i32
  }
  func.func @transform_2(%arg0: i32, %arg1: i32) -> (i32, i32) {
    %c0_i32 = arith.constant 0 : i32
    %c0_i32_0 = arith.constant 0 : i32
    %c0_i32_1 = arith.constant 0 : i32
    return %c0_i32, %c0_i32_0 : i32, i32
  }
  func.func @transform_3(%arg0: i32, %arg1: i32) -> (i32, i32) {
    %c0_i32 = arith.constant 0 : i32
    %c0_i32_0 = arith.constant 0 : i32
    %c0_i32_1 = arith.constant 0 : i32
    return %c0_i32, %c0_i32_0 : i32, i32
  }
  func.func @transform_4(%arg0: i32, %arg1: i32) -> (i32, i32) {
    %c0_i32 = arith.constant 0 : i32
    %c0_i32_0 = arith.constant 0 : i32
    %c0_i32_1 = arith.constant 0 : i32
    return %c0_i32, %c0_i32_0 : i32, i32
  }
  func.func @transform_5(%arg0: i32, %arg1: i32) -> (i32, i32, i32) {
    %c0_i32 = arith.constant 0 : i32
    %c0_i32_0 = arith.constant 0 : i32
    return %arg0, %c0_i32, %arg1 : i32, i32, i32
  }
}

module attributes {stable_mosaic.version = 11 : i64} {
  func.func @fcn_head_kernel(%arg0: i32, %arg1: i32, %arg2: memref<1x16x512xbf16, #tpu.memory_space<vmem>>, %arg3: memref<9x4x16xbf16, #tpu.memory_space<vmem>>, %arg4: memref<4x1xf32, #tpu.memory_space<vmem>>, %arg5: memref<8x4xbf16, #tpu.memory_space<vmem>>, %arg6: memref<8x1xf32, #tpu.memory_space<vmem>>, %arg7: memref<1x8x384xf32, #tpu.memory_space<vmem>>) attributes {dimension_semantics = [#tpu.dimension_semantics<parallel>, #tpu.dimension_semantics<parallel>], iteration_bounds = array<i64: 2, 1>, scalar_prefetch = 0 : i64, scratch_operands = 0 : i64, tpu.core_type = #tpu.core_type<tc>, window_params = [{transform_indices = @transform_0, window_bounds = array<i64: 1, 16, 512>}, {pipeline_mode = #tpu.pipeline_mode<synchronous>, transform_indices = @transform_1, window_bounds = array<i64: 9, 4, 16>}, {pipeline_mode = #tpu.pipeline_mode<synchronous>, transform_indices = @transform_2, window_bounds = array<i64: 4, 1>}, {pipeline_mode = #tpu.pipeline_mode<synchronous>, transform_indices = @transform_3, window_bounds = array<i64: 8, 4>}, {pipeline_mode = #tpu.pipeline_mode<synchronous>, transform_indices = @transform_4, window_bounds = array<i64: 8, 1>}, {transform_indices = @transform_5, window_bounds = array<i64: 1, 8, 384>}]} {
    %c0 = arith.constant 0 : index
    %c0_0 = arith.constant 0 : index
    %c0_1 = arith.constant 0 : index
    %0 = vector.load %arg2[%c0, %c0_0, %c0_1] : memref<1x16x512xbf16, #tpu.memory_space<vmem>>, vector<1x16x512xbf16>
    %1 = vector.shape_cast %0 : vector<1x16x512xbf16> to vector<16x512xbf16>
    %2 = vector.extract_strided_slice %1 {offsets = [0, 0], sizes = [16, 384], strides = [1, 1]} : vector<16x512xbf16> to vector<16x384xbf16>
    %c0_2 = arith.constant 0 : index
    %c0_3 = arith.constant 0 : index
    %c0_4 = arith.constant 0 : index
    %3 = vector.load %arg3[%c0_2, %c0_3, %c0_4] : memref<9x4x16xbf16, #tpu.memory_space<vmem>>, vector<1x4x16xbf16>
    %4 = vector.shape_cast %3 : vector<1x4x16xbf16> to vector<4x16xbf16>
    %cst = arith.constant dense<0.000000e+00> : vector<4x384xf32>
    %5 = tpu.matmul %4, %2, %cst {dimension_numbers = #tpu.dot_dimension_numbers<[1], [0], [0], [1], [0, 0, 1, 1], [], []>} : vector<4x16xbf16>, vector<16x384xbf16>, vector<4x384xf32> -> vector<4x384xf32>
    %6 = vector.extract_strided_slice %1 {offsets = [0, 1], sizes = [16, 384], strides = [1, 1]} : vector<16x512xbf16> to vector<16x384xbf16>
    %c1 = arith.constant 1 : index
    %c0_5 = arith.constant 0 : index
    %c0_6 = arith.constant 0 : index
    %7 = vector.load %arg3[%c1, %c0_5, %c0_6] : memref<9x4x16xbf16, #tpu.memory_space<vmem>>, vector<1x4x16xbf16>
    %8 = vector.shape_cast %7 : vector<1x4x16xbf16> to vector<4x16xbf16>
    %cst_7 = arith.constant dense<0.000000e+00> : vector<4x384xf32>
    %9 = tpu.matmul %8, %6, %cst_7 {dimension_numbers = #tpu.dot_dimension_numbers<[1], [0], [0], [1], [0, 0, 1, 1], [], []>} : vector<4x16xbf16>, vector<16x384xbf16>, vector<4x384xf32> -> vector<4x384xf32>
    %10 = arith.addf %5, %9 : vector<4x384xf32>
    %11 = vector.extract_strided_slice %1 {offsets = [0, 2], sizes = [16, 384], strides = [1, 1]} : vector<16x512xbf16> to vector<16x384xbf16>
    %c2 = arith.constant 2 : index
    %c0_8 = arith.constant 0 : index
    %c0_9 = arith.constant 0 : index
    %12 = vector.load %arg3[%c2, %c0_8, %c0_9] : memref<9x4x16xbf16, #tpu.memory_space<vmem>>, vector<1x4x16xbf16>
    %13 = vector.shape_cast %12 : vector<1x4x16xbf16> to vector<4x16xbf16>
    %cst_10 = arith.constant dense<0.000000e+00> : vector<4x384xf32>
    %14 = tpu.matmul %13, %11, %cst_10 {dimension_numbers = #tpu.dot_dimension_numbers<[1], [0], [0], [1], [0, 0, 1, 1], [], []>} : vector<4x16xbf16>, vector<16x384xbf16>, vector<4x384xf32> -> vector<4x384xf32>
    %15 = arith.addf %10, %14 : vector<4x384xf32>
    %16 = vector.extract_strided_slice %1 {offsets = [0, 18], sizes = [16, 384], strides = [1, 1]} : vector<16x512xbf16> to vector<16x384xbf16>
    %c3 = arith.constant 3 : index
    %c0_11 = arith.constant 0 : index
    %c0_12 = arith.constant 0 : index
    %17 = vector.load %arg3[%c3, %c0_11, %c0_12] : memref<9x4x16xbf16, #tpu.memory_space<vmem>>, vector<1x4x16xbf16>
    %18 = vector.shape_cast %17 : vector<1x4x16xbf16> to vector<4x16xbf16>
    %cst_13 = arith.constant dense<0.000000e+00> : vector<4x384xf32>
    %19 = tpu.matmul %18, %16, %cst_13 {dimension_numbers = #tpu.dot_dimension_numbers<[1], [0], [0], [1], [0, 0, 1, 1], [], []>} : vector<4x16xbf16>, vector<16x384xbf16>, vector<4x384xf32> -> vector<4x384xf32>
    %20 = arith.addf %15, %19 : vector<4x384xf32>
    %21 = vector.extract_strided_slice %1 {offsets = [0, 19], sizes = [16, 384], strides = [1, 1]} : vector<16x512xbf16> to vector<16x384xbf16>
    %c4 = arith.constant 4 : index
    %c0_14 = arith.constant 0 : index
    %c0_15 = arith.constant 0 : index
    %22 = vector.load %arg3[%c4, %c0_14, %c0_15] : memref<9x4x16xbf16, #tpu.memory_space<vmem>>, vector<1x4x16xbf16>
    %23 = vector.shape_cast %22 : vector<1x4x16xbf16> to vector<4x16xbf16>
    %cst_16 = arith.constant dense<0.000000e+00> : vector<4x384xf32>
    %24 = tpu.matmul %23, %21, %cst_16 {dimension_numbers = #tpu.dot_dimension_numbers<[1], [0], [0], [1], [0, 0, 1, 1], [], []>} : vector<4x16xbf16>, vector<16x384xbf16>, vector<4x384xf32> -> vector<4x384xf32>
    %25 = arith.addf %20, %24 : vector<4x384xf32>
    %26 = vector.extract_strided_slice %1 {offsets = [0, 20], sizes = [16, 384], strides = [1, 1]} : vector<16x512xbf16> to vector<16x384xbf16>
    %c5 = arith.constant 5 : index
    %c0_17 = arith.constant 0 : index
    %c0_18 = arith.constant 0 : index
    %27 = vector.load %arg3[%c5, %c0_17, %c0_18] : memref<9x4x16xbf16, #tpu.memory_space<vmem>>, vector<1x4x16xbf16>
    %28 = vector.shape_cast %27 : vector<1x4x16xbf16> to vector<4x16xbf16>
    %cst_19 = arith.constant dense<0.000000e+00> : vector<4x384xf32>
    %29 = tpu.matmul %28, %26, %cst_19 {dimension_numbers = #tpu.dot_dimension_numbers<[1], [0], [0], [1], [0, 0, 1, 1], [], []>} : vector<4x16xbf16>, vector<16x384xbf16>, vector<4x384xf32> -> vector<4x384xf32>
    %30 = arith.addf %25, %29 : vector<4x384xf32>
    %31 = vector.extract_strided_slice %1 {offsets = [0, 36], sizes = [16, 384], strides = [1, 1]} : vector<16x512xbf16> to vector<16x384xbf16>
    %c6 = arith.constant 6 : index
    %c0_20 = arith.constant 0 : index
    %c0_21 = arith.constant 0 : index
    %32 = vector.load %arg3[%c6, %c0_20, %c0_21] : memref<9x4x16xbf16, #tpu.memory_space<vmem>>, vector<1x4x16xbf16>
    %33 = vector.shape_cast %32 : vector<1x4x16xbf16> to vector<4x16xbf16>
    %cst_22 = arith.constant dense<0.000000e+00> : vector<4x384xf32>
    %34 = tpu.matmul %33, %31, %cst_22 {dimension_numbers = #tpu.dot_dimension_numbers<[1], [0], [0], [1], [0, 0, 1, 1], [], []>} : vector<4x16xbf16>, vector<16x384xbf16>, vector<4x384xf32> -> vector<4x384xf32>
    %35 = arith.addf %30, %34 : vector<4x384xf32>
    %36 = vector.extract_strided_slice %1 {offsets = [0, 37], sizes = [16, 384], strides = [1, 1]} : vector<16x512xbf16> to vector<16x384xbf16>
    %c7 = arith.constant 7 : index
    %c0_23 = arith.constant 0 : index
    %c0_24 = arith.constant 0 : index
    %37 = vector.load %arg3[%c7, %c0_23, %c0_24] : memref<9x4x16xbf16, #tpu.memory_space<vmem>>, vector<1x4x16xbf16>
    %38 = vector.shape_cast %37 : vector<1x4x16xbf16> to vector<4x16xbf16>
    %cst_25 = arith.constant dense<0.000000e+00> : vector<4x384xf32>
    %39 = tpu.matmul %38, %36, %cst_25 {dimension_numbers = #tpu.dot_dimension_numbers<[1], [0], [0], [1], [0, 0, 1, 1], [], []>} : vector<4x16xbf16>, vector<16x384xbf16>, vector<4x384xf32> -> vector<4x384xf32>
    %40 = arith.addf %35, %39 : vector<4x384xf32>
    %41 = vector.extract_strided_slice %1 {offsets = [0, 38], sizes = [16, 384], strides = [1, 1]} : vector<16x512xbf16> to vector<16x384xbf16>
    %c8 = arith.constant 8 : index
    %c0_26 = arith.constant 0 : index
    %c0_27 = arith.constant 0 : index
    %42 = vector.load %arg3[%c8, %c0_26, %c0_27] : memref<9x4x16xbf16, #tpu.memory_space<vmem>>, vector<1x4x16xbf16>
    %43 = vector.shape_cast %42 : vector<1x4x16xbf16> to vector<4x16xbf16>
    %cst_28 = arith.constant dense<0.000000e+00> : vector<4x384xf32>
    %44 = tpu.matmul %43, %41, %cst_28 {dimension_numbers = #tpu.dot_dimension_numbers<[1], [0], [0], [1], [0, 0, 1, 1], [], []>} : vector<4x16xbf16>, vector<16x384xbf16>, vector<4x384xf32> -> vector<4x384xf32>
    %45 = arith.addf %40, %44 : vector<4x384xf32>
    %c0_29 = arith.constant 0 : index
    %c0_30 = arith.constant 0 : index
    %46 = vector.load %arg4[%c0_29, %c0_30] : memref<4x1xf32, #tpu.memory_space<vmem>>, vector<4x1xf32>
    %47 = vector.broadcast %46 : vector<4x1xf32> to vector<4x384xf32>
    %48 = arith.addf %45, %47 : vector<4x384xf32>
    %cst_31 = arith.constant 0.000000e+00 : f32
    %49 = vector.broadcast %cst_31 : f32 to vector<4x384xf32>
    %50 = arith.maximumf %48, %49 : vector<4x384xf32>
    %c0_32 = arith.constant 0 : index
    %c0_33 = arith.constant 0 : index
    %51 = vector.load %arg5[%c0_32, %c0_33] : memref<8x4xbf16, #tpu.memory_space<vmem>>, vector<8x4xbf16>
    %52 = arith.truncf %50 : vector<4x384xf32> to vector<4x384xbf16>
    %cst_34 = arith.constant dense<0.000000e+00> : vector<8x384xf32>
    %53 = tpu.matmul %51, %52, %cst_34 {dimension_numbers = #tpu.dot_dimension_numbers<[1], [0], [0], [1], [0, 0, 1, 1], [], []>} : vector<8x4xbf16>, vector<4x384xbf16>, vector<8x384xf32> -> vector<8x384xf32>
    %c0_35 = arith.constant 0 : index
    %c0_36 = arith.constant 0 : index
    %54 = vector.load %arg6[%c0_35, %c0_36] : memref<8x1xf32, #tpu.memory_space<vmem>>, vector<8x1xf32>
    %55 = vector.broadcast %54 : vector<8x1xf32> to vector<8x384xf32>
    %56 = arith.addf %53, %55 : vector<8x384xf32>
    %c0_37 = arith.constant 0 : index
    %c0_38 = arith.constant 0 : index
    %c0_39 = arith.constant 0 : index
    %57 = vector.load %arg7[%c0_37, %c0_38, %c0_39] : memref<1x8x384xf32, #tpu.memory_space<vmem>>, vector<1x8x384xf32>
    %58 = vector.shape_cast %57 : vector<1x8x384xf32> to vector<8x384xf32>
    %59 = vector.shape_cast %56 : vector<8x384xf32> to vector<1x8x384xf32>
    tpu.vector_store %arg7[%c0_37, %c0_38, %c0_39], %59 {strides = array<i32>} : memref<1x8x384xf32, #tpu.memory_space<vmem>>, vector<1x8x384xf32>,
    return
  }
  func.func @transform_0(%arg0: i32, %arg1: i32) -> (i32, i32, i32) {
    %c0_i32 = arith.constant 0 : i32
    %c0_i32_0 = arith.constant 0 : i32
    return %arg0, %c0_i32, %arg1 : i32, i32, i32
  }
  func.func @transform_1(%arg0: i32, %arg1: i32) -> (i32, i32, i32) {
    %c0_i32 = arith.constant 0 : i32
    %c0_i32_0 = arith.constant 0 : i32
    %c0_i32_1 = arith.constant 0 : i32
    %c0_i32_2 = arith.constant 0 : i32
    return %c0_i32, %c0_i32_0, %c0_i32_1 : i32, i32, i32
  }
  func.func @transform_2(%arg0: i32, %arg1: i32) -> (i32, i32) {
    %c0_i32 = arith.constant 0 : i32
    %c0_i32_0 = arith.constant 0 : i32
    %c0_i32_1 = arith.constant 0 : i32
    return %c0_i32, %c0_i32_0 : i32, i32
  }
  func.func @transform_3(%arg0: i32, %arg1: i32) -> (i32, i32) {
    %c0_i32 = arith.constant 0 : i32
    %c0_i32_0 = arith.constant 0 : i32
    %c0_i32_1 = arith.constant 0 : i32
    return %c0_i32, %c0_i32_0 : i32, i32
  }
  func.func @transform_4(%arg0: i32, %arg1: i32) -> (i32, i32) {
    %c0_i32 = arith.constant 0 : i32
    %c0_i32_0 = arith.constant 0 : i32
    %c0_i32_1 = arith.constant 0 : i32
    return %c0_i32, %c0_i32_0 : i32, i32
  }
  func.func @transform_5(%arg0: i32, %arg1: i32) -> (i32, i32, i32) {
    %c0_i32 = arith.constant 0 : i32
    %c0_i32_0 = arith.constant 0 : i32
    return %arg0, %c0_i32, %arg1 : i32, i32, i32
  }
}

</mosaic_0001>

<llo_original>
// kernel: _lambda_.1
$region0: #{_lambda_.1}
  #allocation0 [shape = 'u32[]', space=smem, size = 0x4, offset = 0x4, fixed_abs, tag = 'smem constant byte address 0x4 - core index']
  #allocation1 [shape = 'u32[72,128]{1,0:T(1,128)}', space=vmem, size = 0x9000, scoped, tag = 'internal scratch']
  %s0 = inlined_call_operand.vmem [shape: bf16[2,16,512], index: 0, kind: input, shape index: {}]
  %s1 = inlined_call_operand.vmem [shape: bf16[9,4,16], index: 1, kind: input, shape index: {}]
  %s2 = inlined_call_operand.vmem [shape: f32[4,1], index: 2, kind: input, shape index: {}]
  %s3 = inlined_call_operand.vmem [shape: bf16[8,4], index: 3, kind: input, shape index: {}]
  %s4 = inlined_call_operand.vmem [shape: f32[8,1], index: 4, kind: input, shape index: {}]
  %s5 = inlined_call_operand.vmem [shape: f32[2,8,384], index: 5, kind: output, shape index: {}]
  %s6 = sld [smem:[#allocation0]]
  $region53: #{_lambda_.1} parent=0
    _
  %s8 = ssub.s32 1, %s6
  %s9 = scalar_select 0, %s8, %s6
  loop: start=0, step=1, limit=4
  $region2: #{_lambda_.1} parent=0 // loop_pre_header
    _
  $region3: #{_lambda_.1} parent=0 // loop_header
    %s11 = sphi 0, %s15
    %p12 = scmp.ge.s32.totalorder %s11, 4
    %s18 = sphi 0, %s30
    %s19 = sphi 0, %s26
    %s20 = sphi 0, %s18
    %s21 = sphi 0, %s19
    %s22 = sphi 0, %s20
    %s23 = sphi 0, %s21
    %s35 = sphi 0, %s37
    %s38 = sphi 0, %s35
    %s39 = sphi 0, %s38
    %s55 = sphi 0, %s39
    %s59 = sphi 0, %s59
    %s61 = sphi 0, %s59
    %s62 = sphi 0, %s61
    %s76 = sphi 0, %s62
    %s80 = sphi 0, %s80
    %s82 = sphi 0, %s80
    %s83 = sphi 0, %s82
    %s97 = sphi 0, %s83
    %s101 = sphi 0, %s101
    %s103 = sphi 0, %s101
    %s104 = sphi 0, %s103
    %s118 = sphi 0, %s104
    %s122 = sphi 0, %s122
    %s124 = sphi 0, %s122
    %s125 = sphi 0, %s124
    %s139 = sphi 0, %s125
    %s147 = sphi 0, %s149
    %s150 = sphi 0, %s147
    %s151 = sphi 0, %s150
    %s167 = sphi 0, %s151
  $region4: #{_lambda_.1} parent=0 // loop_header_branch
    %14 = sbr.rel (%p12) target = $region8
  $region5: #{_lambda_.1} parent=0 // loop_body
    %s16 = ssub.s32 %s11, 1
    %s17 = ssub.s32 %s11, 2
    %s24 = sadd.s32 1, %s19
    %p25 = scmp.ge.s32.totalorder %s24, 1
    %s26 = scalar_select %p25, 0, %s24
    %s27 = sadd.s32 1, %s18
    %s28 = scalar_select %p25, %s27, %s18
    %p29 = scmp.ge.s32.totalorder %s28, 2
    %s30 = scalar_select %p29, 0, %s28
    %s31 = ssub.s32 %s18, %s30
    %s32 = ssub.s32 %s19, %s26
    %s33 = sor.u32 %s31, %s32
    %p34 = scmp.eq.s32.totalorder %s33, 0
    %s36 = sadd.s32 %s35, 1
    %s37 = scalar_select %p34, %s35, %s36
    %p40 = pneg %p34
    %p41 = scmp.eq.s32.totalorder %s11, 1
    %p42 = por %p40, %p41
    %p43 = scmp.ne.s32.totalorder %s35, %s38
    %p44 = scmp.eq.s32.totalorder %s11, 0
    %p45 = por %p43, %p44
    %p46 = scmp.ne.s32.totalorder %s35, %s38
    %p47 = scmp.eq.s32.totalorder %s16, 1
    %p48 = por %p46, %p47
    %p49 = scmp.ne.s32.totalorder %s38, %s39
    %p50 = scmp.eq.s32.totalorder %s16, 0
    %p51 = por %p49, %p50
    %p52 = scmp.ne.s32.totalorder %s38, %s39
    %p53 = scmp.eq.s32.totalorder %s17, 1
    %p54 = por %p52, %p53
    %p56 = scmp.ne.s32.totalorder %s39, %s55
    %p57 = scmp.eq.s32.totalorder %s17, 0
    %p58 = por %p56, %p57
    %s60 = sadd.s32 %s59, 1
    %p63 = scmp.eq.s32.totalorder %s11, 1
    %p64 = scmp.ne.s32.totalorder %s59, %s61
    %p65 = scmp.eq.s32.totalorder %s11, 0
    %p66 = por %p64, %p65
    %p67 = scmp.ne.s32.totalorder %s59, %s61
    %p68 = scmp.eq.s32.totalorder %s16, 1
    %p69 = por %p67, %p68
    %p70 = scmp.ne.s32.totalorder %s61, %s62
    %p71 = scmp.eq.s32.totalorder %s16, 0
    %p72 = por %p70, %p71
    %p73 = scmp.ne.s32.totalorder %s61, %s62
    %p74 = scmp.eq.s32.totalorder %s17, 1
    %p75 = por %p73, %p74
    %p77 = scmp.ne.s32.totalorder %s62, %s76
    %p78 = scmp.eq.s32.totalorder %s17, 0
    %p79 = por %p77, %p78
    %s81 = sadd.s32 %s80, 1
    %p84 = scmp.eq.s32.totalorder %s11, 1
    %p85 = scmp.ne.s32.totalorder %s80, %s82
    %p86 = scmp.eq.s32.totalorder %s11, 0
    %p87 = por %p85, %p86
    %p88 = scmp.ne.s32.totalorder %s80, %s82
    %p89 = scmp.eq.s32.totalorder %s16, 1
    %p90 = por %p88, %p89
    %p91 = scmp.ne.s32.totalorder %s82, %s83
    %p92 = scmp.eq.s32.totalorder %s16, 0
    %p93 = por %p91, %p92
    %p94 = scmp.ne.s32.totalorder %s82, %s83
    %p95 = scmp.eq.s32.totalorder %s17, 1
    %p96 = por %p94, %p95
    %p98 = scmp.ne.s32.totalorder %s83, %s97
    %p99 = scmp.eq.s32.totalorder %s17, 0
    %p100 = por %p98, %p99
    %s102 = sadd.s32 %s101, 1
    %p105 = scmp.eq.s32.totalorder %s11, 1
    %p106 = scmp.ne.s32.totalorder %s101, %s103
    %p107 = scmp.eq.s32.totalorder %s11, 0
    %p108 = por %p106, %p107
    %p109 = scmp.ne.s32.totalorder %s101, %s103
    %p110 = scmp.eq.s32.totalorder %s16, 1
    %p111 = por %p109, %p110
    %p112 = scmp.ne.s32.totalorder %s103, %s104
    %p113 = scmp.eq.s32.totalorder %s16, 0
    %p114 = por %p112, %p113
    %p115 = scmp.ne.s32.totalorder %s103, %s104
    %p116 = scmp.eq.s32.totalorder %s17, 1
    %p117 = por %p115, %p116
    %p119 = scmp.ne.s32.totalorder %s104, %s118
    %p120 = scmp.eq.s32.totalorder %s17, 0
    %p121 = por %p119, %p120
    %s123 = sadd.s32 %s122, 1
    %p126 = scmp.eq.s32.totalorder %s11, 1
    %p127 = scmp.ne.s32.totalorder %s122, %s124
    %p128 = scmp.eq.s32.totalorder %s11, 0
    %p129 = por %p127, %p128
    %p130 = scmp.ne.s32.totalorder %s122, %s124
    %p131 = scmp.eq.s32.totalorder %s16, 1
    %p132 = por %p130, %p131
    %p133 = scmp.ne.s32.totalorder %s124, %s125
    %p134 = scmp.eq.s32.totalorder %s16, 0
    %p135 = por %p133, %p134
    %p136 = scmp.ne.s32.totalorder %s124, %s125
    %p137 = scmp.eq.s32.totalorder %s17, 1
    %p138 = por %p136, %p137
    %p140 = scmp.ne.s32.totalorder %s125, %s139
    %p141 = scmp.eq.s32.totalorder %s17, 0
    %p142 = por %p140, %p141
    %s143 = ssub.s32 %s18, %s30
    %s144 = ssub.s32 %s19, %s26
    %s145 = sor.u32 %s143, %s144
    %p146 = scmp.eq.s32.totalorder %s145, 0
    %s148 = sadd.s32 %s147, 1
    %s149 = scalar_select %p146, %s147, %s148
    %p152 = pneg %p146
    %p153 = scmp.eq.s32.totalorder %s11, 1
    %p154 = por %p152, %p153
    %p155 = scmp.ne.s32.totalorder %s147, %s150
    %p156 = scmp.eq.s32.totalorder %s11, 0
    %p157 = por %p155, %p156
    %p158 = scmp.ne.s32.totalorder %s147, %s150
    %p159 = scmp.eq.s32.totalorder %s16, 1
    %p160 = por %p158, %p159
    %p161 = scmp.ne.s32.totalorder %s150, %s151
    %p162 = scmp.eq.s32.totalorder %s16, 0
    %p163 = por %p161, %p162
    %p164 = scmp.ne.s32.totalorder %s150, %s151
    %p165 = scmp.eq.s32.totalorder %s17, 1
    %p166 = por %p164, %p165
    %p168 = scmp.ne.s32.totalorder %s151, %s167
    %p169 = scmp.eq.s32.totalorder %s17, 0
    %p170 = por %p168, %p169
    %p171 = scmp.le.s32.totalorder 1, %s11
    %p172 = scmp.lt.s32.totalorder %s11, 3
    %p173 = pnand %p171, %p172
    %p174 = pneg %p173
    // Predicated region
    $region9: #{_lambda_.1} parent=5 // pred_check
      _
    $region10: #{_lambda_.1} parent=5 // pred_check_branch
      %176 = sbr.rel (%p173) target = $region12
    $region11: #{_lambda_.1} parent=5 // pred_region
      %s177 = ssub.s32 %s11, 1
      // Predicated region
      $region13: #{_lambda_.1} parent=11 // pred_check
        %p178 = pneg %p72
      $region14: #{_lambda_.1} parent=11 // pred_check_branch
        %180 = sbr.rel (%p178) target = $region16
      $region15: #{_lambda_.1} parent=11 // pred_region
        _
      $region16: #{_lambda_.1} parent=11 // pred_fallthru
        _
      // Predicated region
      $region17: #{_lambda_.1} parent=11 // pred_check
        %p181 = pneg %p93
      $region18: #{_lambda_.1} parent=11 // pred_check_branch
        %183 = sbr.rel (%p181) target = $region20
      $region19: #{_lambda_.1} parent=11 // pred_region
        _
      $region20: #{_lambda_.1} parent=11 // pred_fallthru
        _
      // Predicated region
      $region21: #{_lambda_.1} parent=11 // pred_check
        %p184 = pneg %p114
      $region22: #{_lambda_.1} parent=11 // pred_check_branch
        %186 = sbr.rel (%p184) target = $region24
      $region23: #{_lambda_.1} parent=11 // pred_region
        _
      $region24: #{_lambda_.1} parent=11 // pred_fallthru
        _
      // Predicated region
      $region25: #{_lambda_.1} parent=11 // pred_check
        %p187 = pneg %p135
      $region26: #{_lambda_.1} parent=11 // pred_check_branch
        %189 = sbr.rel (%p187) target = $region28
      $region27: #{_lambda_.1} parent=11 // pred_region
        _
      $region28: #{_lambda_.1} parent=11 // pred_fallthru
        _
    $region12: #{_lambda_.1} parent=5 // pred_fallthru
      _
    %p190 = scmp.lt.s32.totalorder %s11, 2
    // Predicated region
    $region29: #{_lambda_.1} parent=5 // pred_check
      %p191 = pneg %p190
    $region30: #{_lambda_.1} parent=5 // pred_check_branch
      %193 = sbr.rel (%p191) target = $region32
    $region31: #{_lambda_.1} parent=5 // pred_region
      // Predicated region
      $region33: #{_lambda_.1} parent=31 // pred_check
        %p194 = pneg %p45
      $region34: #{_lambda_.1} parent=31 // pred_check_branch
        %196 = sbr.rel (%p194) target = $region36
      $region35: #{_lambda_.1} parent=31 // pred_region
        %s197 = smul.u32 4, %s19
        %p198 = scmp.lt.s32.totalorder %s18, 1
        %s199 = scalar_select %p198, %s18, 1
        %p200 = scmp.lt.s32.totalorder %s197, 3
        %s201 = scalar_select %p200, %s197, 3
        %s202 = smul.addr %s199, 8
        %s203 = sadd.s32 %s201, %s202
        %s204 = smul.addr %s203, 4
        %s205 = scalar_lea.vmem %s0, %s204
        %s206 = smul.u32 4, %s19
      $region36: #{_lambda_.1} parent=31 // pred_fallthru
        _
    $region32: #{_lambda_.1} parent=5 // pred_fallthru
      _
    %p207 = scmp.le.s32.totalorder 1, %s11
    %p208 = scmp.lt.s32.totalorder %s11, 3
    %p209 = pnand %p207, %p208
    %p210 = pneg %p209
    // Predicated region
    $region37: #{_lambda_.1} parent=5 // pred_check
      _
    $region38: #{_lambda_.1} parent=5 // pred_check_branch
      %212 = sbr.rel (%p209) target = $region40
    $region39: #{_lambda_.1} parent=5 // pred_region
      %s213 = ssub.s32 %s11, 1
      %s214 = smul.u32 4, %s21
      %p215 = scmp.lt.s32.totalorder %s20, 1
      %s216 = scalar_select %p215, %s20, 1
      %p217 = scmp.lt.s32.totalorder %s214, 3
      %s218 = scalar_select %p217, %s214, 3
      %s219 = smul.addr %s216, 8
      %s220 = sadd.s32 %s218, %s219
      %s221 = smul.addr %s220, 4
      %s222 = scalar_lea.vmem %s0, %s221
      %p223 = pneg %p51
      %p224 = pneg %p48
      %p225 = pneg %p72
      %p226 = pneg %p69
      %p227 = pneg %p93
      %p228 = pneg %p90
      %p229 = pneg %p114
      %p230 = pneg %p111
      %p231 = pneg %p135
      %p232 = pneg %p132
      %p233 = pneg %p163
      %p234 = pneg %p160
      %s235 = smul.u32 3, %s21
      %p236 = scmp.lt.s32.totalorder %s20, 1
      %s237 = scalar_select %p236, %s20, 1
      %p238 = scmp.lt.s32.totalorder %s235, 2
      %s239 = scalar_select %p238, %s235, 2
      %s240 = smul.addr %s237, 3
      %s241 = sadd.s32 %s239, %s240
      %s242 = smul.addr %s241, 8
      %s243 = scalar_lea.vmem %s5, %s242
      %s244 = smul.u32 4, %s21
      %p245 = scmp.lt.s32.totalorder %s20, 1
      %s246 = scalar_select %p245, %s20, 1
      %p247 = scmp.lt.s32.totalorder %s244, 3
      %s248 = scalar_select %p247, %s244, 3
      %s249 = smul.addr %s246, 8
      %s250 = sadd.s32 %s248, %s249
      %s251 = smul.addr %s250, 4
      %s252 = scalar_lea.vmem %s0, %s251
      %s253 = smul.u32 4, %s21
      %s254 = smul.u32 3, %s21
      %p255 = scmp.lt.s32.totalorder %s20, 1
      %s256 = scalar_select %p255, %s20, 1
      %p257 = scmp.lt.s32.totalorder %s254, 2
      %s258 = scalar_select %p257, %s254, 2
      %s259 = smul.addr %s256, 3
      %s260 = sadd.s32 %s258, %s259
      %s261 = smul.addr %s260, 8
      %s262 = scalar_lea.vmem %s5, %s261
      %s263 = smul.u32 3, %s21
      %v265 = vld [vmem:[%s252] sm:$0xff]
      %v266 = vld [vmem:[%s252 + $0x8] sm:$0xff]
      %v267 = vld [vmem:[%s252 + $0x10] sm:$0xff]
      %v268 = vld [vmem:[%s252 + $0x18] sm:$0xff]
      %v269 = vld [vmem:[%s1] sm:$0x3]
      %s270 = scalar_lea.vmem %s1, 2
      %v271 = vld [vmem:[%s270] sm:$0x3]
      %v276 = vunpack.c.l.b16 %v265
      %v277 = vunpack.c.h.b16 %v265
      %v278 = vunpack.c.l.b16 %v266
      %v279 = vunpack.c.h.b16 %v266
      %v280 = vunpack.c.l.b16 %v267
      %v281 = vunpack.c.h.b16 %v267
      %v282 = vunpack.c.l.b16 %v268
      %v283 = vunpack.c.h.b16 %v268
      %v284 = vpack.c.b16 %v280, %v276
      %v285 = vpack.c.b16 %v281, %v277
      %v286 = vpack.c.b16 %v282, %v278
      %v287 = vpack.c.b16 %v283, %v279
      %288 = vrot.lane.b32.xlu0 %v284, 127
      %v289 = vpop.permute.xlu0 %288
      %290 = vrot.lane.b32.xlu0 %v285, 127
      %v291 = vpop.permute.xlu0 %290
      %292 = vrot.lane.b32.xlu0 %v286, 127
      %v293 = vpop.permute.xlu0 %292
      %294 = vrot.lane.b32.xlu0 %v287, 127
      %v295 = vpop.permute.xlu0 %294
      %vm296 = vcmask 1039360
      %v297 = vsel %vm296, %v289, %v291
      %v298 = vsel %vm296, %v291, %v293
      %v299 = vsel %vm296, %v293, %v295
      %vm303 = vcmask 130048
      %v305 = vsel %vm303, %v271, 0
      %307 = vmatpush.bf16.msra.mxu0 0
      %308 = vmatpush.bf16.msra.mxu0 0
      %309 = vmatpush.bf16.msra.mxu0 0
      %310 = vmatpush.bf16.msra.mxu0 0
      %311 = vmatpush.bf16.msra.mxu0 0
      %312 = vmatpush.bf16.msra.mxu0 0
      %313 = vmatpush.bf16.msra.mxu0 0
      %314 = vmatpush.bf16.msra.mxu0 %v297
      %315 = vmatmul.bf16.gmra.mxu0 %v305
      %v316 = vpop.f32.mrf.mxu0
      %v317 = vadd.f32 0.0, %v316
      %v318 = vpop.f32.mrf.mxu0
      %319 = vdwg.mxu0
      %320 = vmatpush.bf16.msra.mxu0 0
      %321 = vmatpush.bf16.msra.mxu0 0
      %322 = vmatpush.bf16.msra.mxu0 0
      %323 = vmatpush.bf16.msra.mxu0 0
      %324 = vmatpush.bf16.msra.mxu0 0
      %325 = vmatpush.bf16.msra.mxu0 0
      %326 = vmatpush.bf16.msra.mxu0 0
      %327 = vmatpush.bf16.msra.mxu0 %v298
      %328 = vmatmul.bf16.gmra.mxu0 %v305
      %v329 = vpop.f32.mrf.mxu0
      %v330 = vadd.f32 0.0, %v329
      %v331 = vpop.f32.mrf.mxu0
      %332 = vdwg.mxu0
      %333 = vmatpush.bf16.msra.mxu0 0
      %334 = vmatpush.bf16.msra.mxu0 0
      %335 = vmatpush.bf16.msra.mxu0 0
      %336 = vmatpush.bf16.msra.mxu0 0
      %337 = vmatpush.bf16.msra.mxu0 0
      %338 = vmatpush.bf16.msra.mxu0 0
      %339 = vmatpush.bf16.msra.mxu0 0
      %340 = vmatpush.bf16.msra.mxu0 %v299
      %341 = vmatmul.bf16.gmra.mxu0 %v305
      %v342 = vpop.f32.mrf.mxu0
      %v343 = vadd.f32 0.0, %v342
      %v344 = vpop.f32.mrf.mxu0
      %345 = vdwg.mxu0
      %v350 = vsel %vm303, %v269, 0
      %352 = vmatpush.bf16.msra.mxu0 0
      %353 = vmatpush.bf16.msra.mxu0 0
      %354 = vmatpush.bf16.msra.mxu0 0
      %355 = vmatpush.bf16.msra.mxu0 0
      %356 = vmatpush.bf16.msra.mxu0 0
      %357 = vmatpush.bf16.msra.mxu0 0
      %358 = vmatpush.bf16.msra.mxu0 0
      %359 = vmatpush.bf16.msra.mxu0 %v284
      %360 = vmatmul.bf16.gmra.mxu0 %v350
      %v361 = vpop.f32.mrf.mxu0
      %v362 = vadd.f32 %v317, %v361
      %v363 = vpop.f32.mrf.mxu0
      %364 = vdwg.mxu0
      %365 = vmatpush.bf16.msra.mxu0 0
      %366 = vmatpush.bf16.msra.mxu0 0
      %367 = vmatpush.bf16.msra.mxu0 0
      %368 = vmatpush.bf16.msra.mxu0 0
      %369 = vmatpush.bf16.msra.mxu0 0
      %370 = vmatpush.bf16.msra.mxu0 0
      %371 = vmatpush.bf16.msra.mxu0 0
      %372 = vmatpush.bf16.msra.mxu0 %v285
      %373 = vmatmul.bf16.gmra.mxu0 %v350
      %v374 = vpop.f32.mrf.mxu0
      %v375 = vadd.f32 %v330, %v374
      %v376 = vpop.f32.mrf.mxu0
      %377 = vdwg.mxu0
      %378 = vmatpush.bf16.msra.mxu0 0
      %379 = vmatpush.bf16.msra.mxu0 0
      %380 = vmatpush.bf16.msra.mxu0 0
      %381 = vmatpush.bf16.msra.mxu0 0
      %382 = vmatpush.bf16.msra.mxu0 0
      %383 = vmatpush.bf16.msra.mxu0 0
      %384 = vmatpush.bf16.msra.mxu0 0
      %385 = vmatpush.bf16.msra.mxu0 %v286
      %386 = vmatmul.bf16.gmra.mxu0 %v350
      %v387 = vpop.f32.mrf.mxu0
      %v388 = vadd.f32 %v343, %v387
      %v389 = vpop.f32.mrf.mxu0
      %390 = vdwg.mxu0
      %s391 = scalar_lea.vmem %s1, 4
      %v392 = vld [vmem:[%s391] sm:$0x3]
      %393 = vrot.lane.b32.xlu0 %v284, 126
      %v394 = vpop.permute.xlu0 %393
      %395 = vrot.lane.b32.xlu0 %v285, 126
      %v396 = vpop.permute.xlu0 %395
      %397 = vrot.lane.b32.xlu0 %v286, 126
      %v398 = vpop.permute.xlu0 %397
      %399 = vrot.lane.b32.xlu0 %v287, 126
      %v400 = vpop.permute.xlu0 %399
      %vm401 = vcmask 1031168
      %v402 = vsel %vm401, %v394, %v396
      %v403 = vsel %vm401, %v396, %v398
      %v404 = vsel %vm401, %v398, %v400
      %v409 = vsel %vm303, %v392, 0
      %411 = vmatpush.bf16.msra.mxu0 0
      %412 = vmatpush.bf16.msra.mxu0 0
      %413 = vmatpush.bf16.msra.mxu0 0
      %414 = vmatpush.bf16.msra.mxu0 0
      %415 = vmatpush.bf16.msra.mxu0 0
      %416 = vmatpush.bf16.msra.mxu0 0
      %417 = vmatpush.bf16.msra.mxu0 0
      %418 = vmatpush.bf16.msra.mxu0 %v402
      %419 = vmatmul.bf16.gmra.mxu0 %v409
      %v420 = vpop.f32.mrf.mxu0
      %v421 = vadd.f32 0.0, %v420
      %v422 = vpop.f32.mrf.mxu0
      %423 = vdwg.mxu0
      %424 = vmatpush.bf16.msra.mxu0 0
      %425 = vmatpush.bf16.msra.mxu0 0
      %426 = vmatpush.bf16.msra.mxu0 0
      %427 = vmatpush.bf16.msra.mxu0 0
      %428 = vmatpush.bf16.msra.mxu0 0
      %429 = vmatpush.bf16.msra.mxu0 0
      %430 = vmatpush.bf16.msra.mxu0 0
      %431 = vmatpush.bf16.msra.mxu0 %v403
      %432 = vmatmul.bf16.gmra.mxu0 %v409
      %v433 = vpop.f32.mrf.mxu0
      %v434 = vadd.f32 0.0, %v433
      %v435 = vpop.f32.mrf.mxu0
      %436 = vdwg.mxu0
      %437 = vmatpush.bf16.msra.mxu0 0
      %438 = vmatpush.bf16.msra.mxu0 0
      %439 = vmatpush.bf16.msra.mxu0 0
      %440 = vmatpush.bf16.msra.mxu0 0
      %441 = vmatpush.bf16.msra.mxu0 0
      %442 = vmatpush.bf16.msra.mxu0 0
      %443 = vmatpush.bf16.msra.mxu0 0
      %444 = vmatpush.bf16.msra.mxu0 %v404
      %445 = vmatmul.bf16.gmra.mxu0 %v409
      %v446 = vpop.f32.mrf.mxu0
      %v447 = vadd.f32 0.0, %v446
      %v448 = vpop.f32.mrf.mxu0
      %449 = vdwg.mxu0
      %v450 = vadd.f32 %v362, %v421
      %v451 = vadd.f32 %v375, %v434
      %v452 = vadd.f32 %v388, %v447
      %s453 = scalar_lea.vmem %s1, 6
      %v454 = vld [vmem:[%s453] sm:$0x3]
      %455 = vrot.lane.b32.xlu0 %v284, 110
      %v456 = vpop.permute.xlu0 %455
      %457 = vrot.lane.b32.xlu0 %v285, 110
      %v458 = vpop.permute.xlu0 %457
      %459 = vrot.lane.b32.xlu0 %v286, 110
      %v460 = vpop.permute.xlu0 %459
      %461 = vrot.lane.b32.xlu0 %v287, 110
      %v462 = vpop.permute.xlu0 %461
      %vm463 = vcmask 900096
      %v464 = vsel %vm463, %v456, %v458
      %v465 = vsel %vm463, %v458, %v460
      %v466 = vsel %vm463, %v460, %v462
      %v471 = vsel %vm303, %v454, 0
      %473 = vmatpush.bf16.msra.mxu0 0
      %474 = vmatpush.bf16.msra.mxu0 0
      %475 = vmatpush.bf16.msra.mxu0 0
      %476 = vmatpush.bf16.msra.mxu0 0
      %477 = vmatpush.bf16.msra.mxu0 0
      %478 = vmatpush.bf16.msra.mxu0 0
      %479 = vmatpush.bf16.msra.mxu0 0
      %480 = vmatpush.bf16.msra.mxu0 %v464
      %481 = vmatmul.bf16.gmra.mxu0 %v471
      %v482 = vpop.f32.mrf.mxu0
      %v483 = vadd.f32 0.0, %v482
      %v484 = vpop.f32.mrf.mxu0
      %485 = vdwg.mxu0
      %486 = vmatpush.bf16.msra.mxu0 0
      %487 = vmatpush.bf16.msra.mxu0 0
      %488 = vmatpush.bf16.msra.mxu0 0
      %489 = vmatpush.bf16.msra.mxu0 0
      %490 = vmatpush.bf16.msra.mxu0 0
      %491 = vmatpush.bf16.msra.mxu0 0
      %492 = vmatpush.bf16.msra.mxu0 0
      %493 = vmatpush.bf16.msra.mxu0 %v465
      %494 = vmatmul.bf16.gmra.mxu0 %v471
      %v495 = vpop.f32.mrf.mxu0
      %v496 = vadd.f32 0.0, %v495
      %v497 = vpop.f32.mrf.mxu0
      %498 = vdwg.mxu0
      %499 = vmatpush.bf16.msra.mxu0 0
      %500 = vmatpush.bf16.msra.mxu0 0
      %501 = vmatpush.bf16.msra.mxu0 0
      %502 = vmatpush.bf16.msra.mxu0 0
      %503 = vmatpush.bf16.msra.mxu0 0
      %504 = vmatpush.bf16.msra.mxu0 0
      %505 = vmatpush.bf16.msra.mxu0 0
      %506 = vmatpush.bf16.msra.mxu0 %v466
      %507 = vmatmul.bf16.gmra.mxu0 %v471
      %v508 = vpop.f32.mrf.mxu0
      %v509 = vadd.f32 0.0, %v508
      %v510 = vpop.f32.mrf.mxu0
      %511 = vdwg.mxu0
      %v512 = vadd.f32 %v450, %v483
      %v513 = vadd.f32 %v451, %v496
      %v514 = vadd.f32 %v452, %v509
      %s515 = scalar_lea.vmem %s1, 8
      %v516 = vld [vmem:[%s515] sm:$0x3]
      %517 = vrot.lane.b32.xlu0 %v284, 109
      %v518 = vpop.permute.xlu0 %517
      %519 = vrot.lane.b32.xlu0 %v285, 109
      %v520 = vpop.permute.xlu0 %519
      %521 = vrot.lane.b32.xlu0 %v286, 109
      %v522 = vpop.permute.xlu0 %521
      %523 = vrot.lane.b32.xlu0 %v287, 109
      %v524 = vpop.permute.xlu0 %523
      %vm525 = vcmask 891904
      %v526 = vsel %vm525, %v518, %v520
      %v527 = vsel %vm525, %v520, %v522
      %v528 = vsel %vm525, %v522, %v524
      %v533 = vsel %vm303, %v516, 0
      %535 = vmatpush.bf16.msra.mxu0 0
      %536 = vmatpush.bf16.msra.mxu0 0
      %537 = vmatpush.bf16.msra.mxu0 0
      %538 = vmatpush.bf16.msra.mxu0 0
      %539 = vmatpush.bf16.msra.mxu0 0
      %540 = vmatpush.bf16.msra.mxu0 0
      %541 = vmatpush.bf16.msra.mxu0 0
      %542 = vmatpush.bf16.msra.mxu0 %v526
      %543 = vmatmul.bf16.gmra.mxu0 %v533
      %v544 = vpop.f32.mrf.mxu0
      %v545 = vadd.f32 0.0, %v544
      %v546 = vpop.f32.mrf.mxu0
      %547 = vdwg.mxu0
      %548 = vmatpush.bf16.msra.mxu0 0
      %549 = vmatpush.bf16.msra.mxu0 0
      %550 = vmatpush.bf16.msra.mxu0 0
      %551 = vmatpush.bf16.msra.mxu0 0
      %552 = vmatpush.bf16.msra.mxu0 0
      %553 = vmatpush.bf16.msra.mxu0 0
      %554 = vmatpush.bf16.msra.mxu0 0
      %555 = vmatpush.bf16.msra.mxu0 %v527
      %556 = vmatmul.bf16.gmra.mxu0 %v533
      %v557 = vpop.f32.mrf.mxu0
      %v558 = vadd.f32 0.0, %v557
      %v559 = vpop.f32.mrf.mxu0
      %560 = vdwg.mxu0
      %561 = vmatpush.bf16.msra.mxu0 0
      %562 = vmatpush.bf16.msra.mxu0 0
      %563 = vmatpush.bf16.msra.mxu0 0
      %564 = vmatpush.bf16.msra.mxu0 0
      %565 = vmatpush.bf16.msra.mxu0 0
      %566 = vmatpush.bf16.msra.mxu0 0
      %567 = vmatpush.bf16.msra.mxu0 0
      %568 = vmatpush.bf16.msra.mxu0 %v528
      %569 = vmatmul.bf16.gmra.mxu0 %v533
      %v570 = vpop.f32.mrf.mxu0
      %v571 = vadd.f32 0.0, %v570
      %v572 = vpop.f32.mrf.mxu0
      %573 = vdwg.mxu0
      %v574 = vadd.f32 %v512, %v545
      %v575 = vadd.f32 %v513, %v558
      %v576 = vadd.f32 %v514, %v571
      %s577 = scalar_lea.vmem %s1, 10
      %v578 = vld [vmem:[%s577] sm:$0x3]
      %579 = vrot.lane.b32.xlu0 %v284, 108
      %v580 = vpop.permute.xlu0 %579
      %581 = vrot.lane.b32.xlu0 %v285, 108
      %v582 = vpop.permute.xlu0 %581
      %583 = vrot.lane.b32.xlu0 %v286, 108
      %v584 = vpop.permute.xlu0 %583
      %585 = vrot.lane.b32.xlu0 %v287, 108
      %v586 = vpop.permute.xlu0 %585
      %vm587 = vcmask 883712
      %v588 = vsel %vm587, %v580, %v582
      %v589 = vsel %vm587, %v582, %v584
      %v590 = vsel %vm587, %v584, %v586
      %v595 = vsel %vm303, %v578, 0
      %597 = vmatpush.bf16.msra.mxu0 0
      %598 = vmatpush.bf16.msra.mxu0 0
      %599 = vmatpush.bf16.msra.mxu0 0
      %600 = vmatpush.bf16.msra.mxu0 0
      %601 = vmatpush.bf16.msra.mxu0 0
      %602 = vmatpush.bf16.msra.mxu0 0
      %603 = vmatpush.bf16.msra.mxu0 0
      %604 = vmatpush.bf16.msra.mxu0 %v588
      %605 = vmatmul.bf16.gmra.mxu0 %v595
      %v606 = vpop.f32.mrf.mxu0
      %v607 = vadd.f32 0.0, %v606
      %v608 = vpop.f32.mrf.mxu0
      %609 = vdwg.mxu0
      %610 = vmatpush.bf16.msra.mxu0 0
      %611 = vmatpush.bf16.msra.mxu0 0
      %612 = vmatpush.bf16.msra.mxu0 0
      %613 = vmatpush.bf16.msra.mxu0 0
      %614 = vmatpush.bf16.msra.mxu0 0
      %615 = vmatpush.bf16.msra.mxu0 0
      %616 = vmatpush.bf16.msra.mxu0 0
      %617 = vmatpush.bf16.msra.mxu0 %v589
      %618 = vmatmul.bf16.gmra.mxu0 %v595
      %v619 = vpop.f32.mrf.mxu0
      %v620 = vadd.f32 0.0, %v619
      %v621 = vpop.f32.mrf.mxu0
      %622 = vdwg.mxu0
      %623 = vmatpush.bf16.msra.mxu0 0
      %624 = vmatpush.bf16.msra.mxu0 0
      %625 = vmatpush.bf16.msra.mxu0 0
      %626 = vmatpush.bf16.msra.mxu0 0
      %627 = vmatpush.bf16.msra.mxu0 0
      %628 = vmatpush.bf16.msra.mxu0 0
      %629 = vmatpush.bf16.msra.mxu0 0
      %630 = vmatpush.bf16.msra.mxu0 %v590
      %631 = vmatmul.bf16.gmra.mxu0 %v595
      %v632 = vpop.f32.mrf.mxu0
      %v633 = vadd.f32 0.0, %v632
      %v634 = vpop.f32.mrf.mxu0
      %635 = vdwg.mxu0
      %v636 = vadd.f32 %v574, %v607
      %v637 = vadd.f32 %v575, %v620
      %v638 = vadd.f32 %v576, %v633
      %s639 = scalar_lea.vmem %s1, 12
      %v640 = vld [vmem:[%s639] sm:$0x3]
      %641 = vrot.lane.b32.xlu0 %v284, 92
      %v642 = vpop.permute.xlu0 %641
      %643 = vrot.lane.b32.xlu0 %v285, 92
      %v644 = vpop.permute.xlu0 %643
      %645 = vrot.lane.b32.xlu0 %v286, 92
      %v646 = vpop.permute.xlu0 %645
      %647 = vrot.lane.b32.xlu0 %v287, 92
      %v648 = vpop.permute.xlu0 %647
      %vm649 = vcmask 752640
      %v650 = vsel %vm649, %v642, %v644
      %v651 = vsel %vm649, %v644, %v646
      %v652 = vsel %vm649, %v646, %v648
      %v657 = vsel %vm303, %v640, 0
      %659 = vmatpush.bf16.msra.mxu0 0
      %660 = vmatpush.bf16.msra.mxu0 0
      %661 = vmatpush.bf16.msra.mxu0 0
      %662 = vmatpush.bf16.msra.mxu0 0
      %663 = vmatpush.bf16.msra.mxu0 0
      %664 = vmatpush.bf16.msra.mxu0 0
      %665 = vmatpush.bf16.msra.mxu0 0
      %666 = vmatpush.bf16.msra.mxu0 %v650
      %667 = vmatmul.bf16.gmra.mxu0 %v657
      %v668 = vpop.f32.mrf.mxu0
      %v669 = vadd.f32 0.0, %v668
      %v670 = vpop.f32.mrf.mxu0
      %671 = vdwg.mxu0
      %672 = vmatpush.bf16.msra.mxu0 0
      %673 = vmatpush.bf16.msra.mxu0 0
      %674 = vmatpush.bf16.msra.mxu0 0
      %675 = vmatpush.bf16.msra.mxu0 0
      %676 = vmatpush.bf16.msra.mxu0 0
      %677 = vmatpush.bf16.msra.mxu0 0
      %678 = vmatpush.bf16.msra.mxu0 0
      %679 = vmatpush.bf16.msra.mxu0 %v651
      %680 = vmatmul.bf16.gmra.mxu0 %v657
      %v681 = vpop.f32.mrf.mxu0
      %v682 = vadd.f32 0.0, %v681
      %v683 = vpop.f32.mrf.mxu0
      %684 = vdwg.mxu0
      %685 = vmatpush.bf16.msra.mxu0 0
      %686 = vmatpush.bf16.msra.mxu0 0
      %687 = vmatpush.bf16.msra.mxu0 0
      %688 = vmatpush.bf16.msra.mxu0 0
      %689 = vmatpush.bf16.msra.mxu0 0
      %690 = vmatpush.bf16.msra.mxu0 0
      %691 = vmatpush.bf16.msra.mxu0 0
      %692 = vmatpush.bf16.msra.mxu0 %v652
      %693 = vmatmul.bf16.gmra.mxu0 %v657
      %v694 = vpop.f32.mrf.mxu0
      %v695 = vadd.f32 0.0, %v694
      %v696 = vpop.f32.mrf.mxu0
      %697 = vdwg.mxu0
      %v698 = vadd.f32 %v636, %v669
      %v699 = vadd.f32 %v637, %v682
      %v700 = vadd.f32 %v638, %v695
      %s701 = scalar_lea.vmem %s1, 14
      %v702 = vld [vmem:[%s701] sm:$0x3]
      %703 = vrot.lane.b32.xlu0 %v284, 91
      %v704 = vpop.permute.xlu0 %703
      %705 = vrot.lane.b32.xlu0 %v285, 91
      %v706 = vpop.permute.xlu0 %705
      %707 = vrot.lane.b32.xlu0 %v286, 91
      %v708 = vpop.permute.xlu0 %707
      %709 = vrot.lane.b32.xlu0 %v287, 91
      %v710 = vpop.permute.xlu0 %709
      %vm711 = vcmask 744448
      %v712 = vsel %vm711, %v704, %v706
      %v713 = vsel %vm711, %v706, %v708
      %v714 = vsel %vm711, %v708, %v710
      %v719 = vsel %vm303, %v702, 0
      %721 = vmatpush.bf16.msra.mxu0 0
      %722 = vmatpush.bf16.msra.mxu0 0
      %723 = vmatpush.bf16.msra.mxu0 0
      %724 = vmatpush.bf16.msra.mxu0 0
      %725 = vmatpush.bf16.msra.mxu0 0
      %726 = vmatpush.bf16.msra.mxu0 0
      %727 = vmatpush.bf16.msra.mxu0 0
      %728 = vmatpush.bf16.msra.mxu0 %v712
      %729 = vmatmul.bf16.gmra.mxu0 %v719
      %v730 = vpop.f32.mrf.mxu0
      %v731 = vadd.f32 0.0, %v730
      %v732 = vpop.f32.mrf.mxu0
      %733 = vdwg.mxu0
      %734 = vmatpush.bf16.msra.mxu0 0
      %735 = vmatpush.bf16.msra.mxu0 0
      %736 = vmatpush.bf16.msra.mxu0 0
      %737 = vmatpush.bf16.msra.mxu0 0
      %738 = vmatpush.bf16.msra.mxu0 0
      %739 = vmatpush.bf16.msra.mxu0 0
      %740 = vmatpush.bf16.msra.mxu0 0
      %741 = vmatpush.bf16.msra.mxu0 %v713
      %742 = vmatmul.bf16.gmra.mxu0 %v719
      %v743 = vpop.f32.mrf.mxu0
      %v744 = vadd.f32 0.0, %v743
      %v745 = vpop.f32.mrf.mxu0
      %746 = vdwg.mxu0
      %747 = vmatpush.bf16.msra.mxu0 0
      %748 = vmatpush.bf16.msra.mxu0 0
      %749 = vmatpush.bf16.msra.mxu0 0
      %750 = vmatpush.bf16.msra.mxu0 0
      %751 = vmatpush.bf16.msra.mxu0 0
      %752 = vmatpush.bf16.msra.mxu0 0
      %753 = vmatpush.bf16.msra.mxu0 0
      %754 = vmatpush.bf16.msra.mxu0 %v714
      %755 = vmatmul.bf16.gmra.mxu0 %v719
      %v756 = vpop.f32.mrf.mxu0
      %v757 = vadd.f32 0.0, %v756
      %v758 = vpop.f32.mrf.mxu0
      %759 = vdwg.mxu0
      %v760 = vadd.f32 %v698, %v731
      %v761 = vadd.f32 %v699, %v744
      %v762 = vadd.f32 %v700, %v757
      %s763 = scalar_lea.vmem %s1, 16
      %v764 = vld [vmem:[%s763] sm:$0x3]
      %765 = vrot.lane.b32.xlu0 %v284, 90
      %v766 = vpop.permute.xlu0 %765
      %767 = vrot.lane.b32.xlu0 %v285, 90
      %v768 = vpop.permute.xlu0 %767
      %769 = vrot.lane.b32.xlu0 %v286, 90
      %v770 = vpop.permute.xlu0 %769
      %771 = vrot.lane.b32.xlu0 %v287, 90
      %v772 = vpop.permute.xlu0 %771
      %vm773 = vcmask 736256
      %v774 = vsel %vm773, %v766, %v768
      %v775 = vsel %vm773, %v768, %v770
      %v776 = vsel %vm773, %v770, %v772
      %v781 = vsel %vm303, %v764, 0
      %783 = vmatpush.bf16.msra.mxu0 0
      %784 = vmatpush.bf16.msra.mxu0 0
      %785 = vmatpush.bf16.msra.mxu0 0
      %786 = vmatpush.bf16.msra.mxu0 0
      %787 = vmatpush.bf16.msra.mxu0 0
      %788 = vmatpush.bf16.msra.mxu0 0
      %789 = vmatpush.bf16.msra.mxu0 0
      %790 = vmatpush.bf16.msra.mxu0 %v774
      %791 = vmatmul.bf16.gmra.mxu0 %v781
      %v792 = vpop.f32.mrf.mxu0
      %v793 = vadd.f32 0.0, %v792
      %v794 = vpop.f32.mrf.mxu0
      %795 = vdwg.mxu0
      %796 = vmatpush.bf16.msra.mxu0 0
      %797 = vmatpush.bf16.msra.mxu0 0
      %798 = vmatpush.bf16.msra.mxu0 0
      %799 = vmatpush.bf16.msra.mxu0 0
      %800 = vmatpush.bf16.msra.mxu0 0
      %801 = vmatpush.bf16.msra.mxu0 0
      %802 = vmatpush.bf16.msra.mxu0 0
      %803 = vmatpush.bf16.msra.mxu0 %v775
      %804 = vmatmul.bf16.gmra.mxu0 %v781
      %v805 = vpop.f32.mrf.mxu0
      %v806 = vadd.f32 0.0, %v805
      %v807 = vpop.f32.mrf.mxu0
      %808 = vdwg.mxu0
      %809 = vmatpush.bf16.msra.mxu0 0
      %810 = vmatpush.bf16.msra.mxu0 0
      %811 = vmatpush.bf16.msra.mxu0 0
      %812 = vmatpush.bf16.msra.mxu0 0
      %813 = vmatpush.bf16.msra.mxu0 0
      %814 = vmatpush.bf16.msra.mxu0 0
      %815 = vmatpush.bf16.msra.mxu0 0
      %816 = vmatpush.bf16.msra.mxu0 %v776
      %817 = vmatmul.bf16.gmra.mxu0 %v781
      %v818 = vpop.f32.mrf.mxu0
      %v819 = vadd.f32 0.0, %v818
      %v820 = vpop.f32.mrf.mxu0
      %821 = vdwg.mxu0
      %v822 = vadd.f32 %v760, %v793
      %v823 = vadd.f32 %v761, %v806
      %v824 = vadd.f32 %v762, %v819
      %v825 = vld [vmem:[%s2] sm:$0xf]
      %827 = vset.pattern.permute.xlu0 0
      %828 = vperm.xlu0 %827, %v825
      %v829 = vpop.permute.xlu0 %828
      %v831 = vadd.f32 %v822, %v829
      %v832 = vadd.f32 %v823, %v829
      %v833 = vadd.f32 %v824, %v829
      %v834 = vmax.f32 %v831, 0.0
      %v835 = vmax.f32 %v832, 0.0
      %v836 = vmax.f32 %v833, 0.0
      %v837 = vld [vmem:[%s3] sm:$0xf]
      %v838 = vpack.c.bf16 %v834, %v834
      %v839 = vpack.c.bf16 %v835, %v835
      %v840 = vpack.c.bf16 %v836, %v836
      %v841 = vld [vmem:[%s4] sm:$0xff]
      %843 = vset.pattern.permute.xlu0 0
      %844 = vperm.xlu0 %843, %v841
      %v845 = vpop.permute.xlu0 %844
      %vm847 = vcmask 31744
      %v849 = vsel %vm847, %v837, 0
      %vm851 = vcmask 1041408
      %v853 = vsel %vm851, %v838, 0
      %v856 = vsel %vm851, %v839, 0
      %v859 = vsel %vm851, %v840, 0
      %861 = vmatpush.bf16.msra.mxu0 0
      %862 = vmatpush.bf16.msra.mxu0 0
      %863 = vmatpush.bf16.msra.mxu0 0
      %864 = vmatpush.bf16.msra.mxu0 0
      %865 = vmatpush.bf16.msra.mxu0 0
      %866 = vmatpush.bf16.msra.mxu0 0
      %867 = vmatpush.bf16.msra.mxu0 0
      %868 = vmatpush.bf16.msra.mxu0 %v853
      %869 = vmatmul.bf16.gmra.mxu0 %v849
      %v870 = vpop.f32.mrf.mxu0
      %v871 = vadd.f32 %v845, %v870
      %v872 = vpop.f32.mrf.mxu0
      %873 = vdwg.mxu0
      %874 = vmatpush.bf16.msra.mxu0 0
      %875 = vmatpush.bf16.msra.mxu0 0
      %876 = vmatpush.bf16.msra.mxu0 0
      %877 = vmatpush.bf16.msra.mxu0 0
      %878 = vmatpush.bf16.msra.mxu0 0
      %879 = vmatpush.bf16.msra.mxu0 0
      %880 = vmatpush.bf16.msra.mxu0 0
      %881 = vmatpush.bf16.msra.mxu0 %v856
      %882 = vmatmul.bf16.gmra.mxu0 %v849
      %v883 = vpop.f32.mrf.mxu0
      %v884 = vadd.f32 %v845, %v883
      %v885 = vpop.f32.mrf.mxu0
      %886 = vdwg.mxu0
      %887 = vmatpush.bf16.msra.mxu0 0
      %888 = vmatpush.bf16.msra.mxu0 0
      %889 = vmatpush.bf16.msra.mxu0 0
      %890 = vmatpush.bf16.msra.mxu0 0
      %891 = vmatpush.bf16.msra.mxu0 0
      %892 = vmatpush.bf16.msra.mxu0 0
      %893 = vmatpush.bf16.msra.mxu0 0
      %894 = vmatpush.bf16.msra.mxu0 %v859
      %895 = vmatmul.bf16.gmra.mxu0 %v849
      %v896 = vpop.f32.mrf.mxu0
      %v897 = vadd.f32 %v845, %v896
      %v898 = vpop.f32.mrf.mxu0
      %899 = vdwg.mxu0
      %900 = vst [vmem:[%s262] sm:$0xff] %v871
      %901 = vst [vmem:[%s262 + $0x8] sm:$0xff] %v884
      %902 = vst [vmem:[%s262 + $0x10] sm:$0xff] %v897
      %s903 = smul.u32 3, %s21
      %p904 = scmp.lt.s32.totalorder %s20, 1
      %s905 = scalar_select %p904, %s20, 1
      %p906 = scmp.lt.s32.totalorder %s903, 2
      %s907 = scalar_select %p906, %s903, 2
      %s908 = smul.addr %s905, 3
      %s909 = sadd.s32 %s907, %s908
      %s910 = smul.addr %s909, 8
      %s911 = scalar_lea.vmem %s5, %s910
      // Predicated region
      $region41: #{_lambda_.1} parent=39 // pred_check
        %p912 = pneg %p160
      $region42: #{_lambda_.1} parent=39 // pred_check_branch
        %914 = sbr.rel (%p912) target = $region44
      $region43: #{_lambda_.1} parent=39 // pred_region
        %s915 = smul.u32 3, %s21
      $region44: #{_lambda_.1} parent=39 // pred_fallthru
        _
    $region40: #{_lambda_.1} parent=5 // pred_fallthru
      _
    %p916 = scmp.le.s32.totalorder 2, %s11
    // Predicated region
    $region45: #{_lambda_.1} parent=5 // pred_check
      %p917 = pneg %p916
    $region46: #{_lambda_.1} parent=5 // pred_check_branch
      %919 = sbr.rel (%p917) target = $region48
    $region47: #{_lambda_.1} parent=5 // pred_region
      %s920 = ssub.s32 %s11, 2
      // Predicated region
      $region49: #{_lambda_.1} parent=47 // pred_check
        %p921 = pneg %p166
      $region50: #{_lambda_.1} parent=47 // pred_check_branch
        %923 = sbr.rel (%p921) target = $region52
      $region51: #{_lambda_.1} parent=47 // pred_region
        %s924 = smul.u32 3, %s23
        %p925 = scmp.lt.s32.totalorder %s22, 1
        %s926 = scalar_select %p925, %s22, 1
        %p927 = scmp.lt.s32.totalorder %s924, 2
        %s928 = scalar_select %p927, %s924, 2
        %s929 = smul.addr %s926, 3
        %s930 = sadd.s32 %s928, %s929
        %s931 = smul.addr %s930, 8
        %s932 = scalar_lea.vmem %s5, %s931
      $region52: #{_lambda_.1} parent=47 // pred_fallthru
        _
    $region48: #{_lambda_.1} parent=5 // pred_fallthru
      _
  $region6: #{_lambda_.1} parent=0 // loop_footer
    %s15 = sadd.s32 1, %s11
  $region7: #{_lambda_.1} parent=0 // loop_footer_branch
    %10 = sbr.rel target = $region3
  $region8: #{_lambda_.1} parent=0 // loop_exit
    _

</llo_original>
